<compile_context>
chip_gen: v5e
topology: v5e:2x2
jax: 0.10.0
libtpu: 0.0.40
codegen_flags: <defaults>
</compile_context>

<pallas_src>
import functools

import jax
import jax.numpy as jnp
from jax.experimental import pallas as pl
from jax.experimental.pallas import tpu as pltpu


_HIGHEST = jax.lax.Precision.HIGHEST
_SINGLE_PASS_VMEM_BUDGET = 40 * 1024 * 1024   # conservative vs v7x 64 MiB VMEM
_TARGET_BLOCK_BYTES = 1 * 1024 * 1024         # ~1 MiB blocks: near HBM roofline


def _se_kernel(x_ref, w1t_ref, w2t_ref, o_ref, *, inv_hw, channels_last, use_mxu):
    """Fused SE: pool + FC1/ReLU + FC2/sigmoid + excite on one resident block.

    x_ref block: (Nb, HW, C) if channels_last else (Nb, C, HW).
    w1t_ref: (C, Cr) = W1.T ;  w2t_ref: (Cr, C) = W2.T
    """
    red_axis = 1 if channels_last else 2
    # Squeeze: global average pool, accumulated in f32.  The cast only feeds
    # the reduction -- no f32 copy of the whole tile stays live.
    pooled = jnp.sum(x_ref[...].astype(jnp.float32), axis=red_axis) * inv_hw  # (Nb, C)

    if use_mxu:
        # Excitation MLP on the MXU (leaves VALU / store slots for the excite pass).
        h = jnp.dot(pooled, w1t_ref[...],
                    preferred_element_type=jnp.float32, precision=_HIGHEST)   # (Nb, Cr)
        h = jnp.maximum(h, 0.0)
        s = jax.nn.sigmoid(
            jnp.dot(h, w2t_ref[...],
                    preferred_element_type=jnp.float32, precision=_HIGHEST))  # (Nb, C)
    else:
        # Tiny C: broadcast-multiply + reduce on the VPU/XLU.
        h = jnp.sum(pooled[:, :, None] * w1t_ref[...][None, :, :], axis=1)    # (Nb, Cr)
        h = jnp.maximum(h, 0.0)
        s = jax.nn.sigmoid(
            jnp.sum(h[:, :, None] * w2t_ref[...][None, :, :], axis=1))        # (Nb, C)

    s = s.astype(o_ref.dtype)
    # Excite: rescale straight from the input ref (native dtype, 1R + 1W).
    if channels_last:
        o_ref[...] = x_ref[...] * s[:, None, :]
    else:
        o_ref[...] = x_ref[...] * s[:, :, None]


def _scale_kernel(s_ref, x_ref, o_ref):
    """Fallback excite pass: o = x * s (s already broadcast-shaped)."""
    o_ref[...] = x_ref[...] * s_ref[...].astype(o_ref.dtype)


def _pick_batch_block(n, per_batch_bytes):
    nb = max(1, min(n, _TARGET_BLOCK_BYTES // max(per_batch_bytes, 1)))
    if n >= 2:                       # keep >= 2 grid steps for megacore / pipelining
        nb = max(1, min(nb, n // 2))
    while n % nb != 0:               # avoid remainder blocks
        nb -= 1
    return nb


def _vmem_limit(block_bytes):
    needed = 4 * block_bytes + (2 << 20)          # in + out, double-buffered, + slack
    if needed <= (16 << 20):                      # fits every generation's default
        return None
    return int(min(max(needed * 5 // 4, 32 << 20), 64 << 20))


def se_layer(x, w1, w2, *, single_pass=None):
    """SE forward.  x: (N, C, H, W); w1: (C//r, C); w2: (C, C//r)."""
    N, C, H, W = x.shape
    Cr = w1.shape[0]
    HW = H * W
    itemsize = jnp.dtype(x.dtype).itemsize
    w_itemsize = jnp.dtype(w1.dtype).itemsize

    # Lane-dense layout: channels on lanes when C is 128-aligned and HW is not.
    channels_last = (C % 128 == 0) and (HW % 128 != 0)
    if channels_last:
        x2 = x.reshape(N, C, HW).transpose(0, 2, 1)            # (N, HW, C)
    else:
        x2 = x.reshape(N, C, HW)                               # (N, C, HW)

    per_batch_bytes = C * HW * itemsize
    weight_bytes = 2 * C * Cr * w_itemsize
    if single_pass is None:
        single_pass = (4 * per_batch_bytes + weight_bytes) <= _SINGLE_PASS_VMEM_BUDGET

    cost = pl.CostEstimate(
        flops=2 * N * C * HW + 4 * N * C * Cr,
        transcendentals=N * C,
        bytes_accessed=2 * N * C * HW * itemsize + weight_bytes,
    )

    if single_pass:
        nb = _pick_batch_block(N, per_batch_bytes)
        grid = (N // nb,)
        if channels_last:
            x_spec = pl.BlockSpec((nb, HW, C), lambda i: (i, 0, 0))
        else:
            x_spec = pl.BlockSpec((nb, C, HW), lambda i: (i, 0, 0))
        kernel = functools.partial(
            _se_kernel, inv_hw=1.0 / HW, channels_last=channels_last,
            use_mxu=(C >= 128))
        out = pl.pallas_call(
            kernel,
            out_shape=jax.ShapeDtypeStruct(x2.shape, x.dtype),
            grid_spec=pltpu.PrefetchScalarGridSpec(
                num_scalar_prefetch=0,
                grid=grid,
                in_specs=[
                    x_spec,
                    pl.BlockSpec((C, Cr), lambda i: (0, 0)),   # W1.T (squeeze)
                    pl.BlockSpec((Cr, C), lambda i: (0, 0)),   # W2.T (excite)
                ],
                out_specs=x_spec,
            ),
            compiler_params=pltpu.CompilerParams(
                dimension_semantics=("parallel",),
                vmem_limit_bytes=_vmem_limit(nb * per_batch_bytes + weight_bytes)),
            cost_estimate=cost,
        )(x2, w1.T, w2.T)
    else:
        # Fallback (block too big for VMEM, e.g. v7x): the tiny SE branch runs
        # in XLA; Pallas does only the spatially tiled excite pass.
        pooled = jnp.mean(x.astype(jnp.float32), axis=(2, 3))                 # (N, C)
        h = jnp.maximum(jnp.dot(pooled, w1.T, precision=_HIGHEST), 0.0)
        s = jax.nn.sigmoid(jnp.dot(h, w2.T, precision=_HIGHEST))              # (N, C) f32

        t = max(128, (_TARGET_BLOCK_BYTES // max(C * itemsize, 1)) // 128 * 128)
        t_hw = HW if HW <= t else t
        grid = (N, pl.cdiv(HW, t_hw))
        if channels_last:
            s3 = s[:, None, :]                                  # (N, 1, C)
            s_spec = pl.BlockSpec((1, 1, C), lambda n, j: (n, 0, 0))
            x_spec = pl.BlockSpec((1, t_hw, C), lambda n, j: (n, j, 0))
        else:
            s3 = s[:, :, None]                                  # (N, C, 1)
            s_spec = pl.BlockSpec((1, C, 1), lambda n, j: (n, 0, 0))
            x_spec = pl.BlockSpec((1, C, t_hw), lambda n, j: (n, 0, j))
        out = pl.pallas_call(
            _scale_kernel,
            out_shape=jax.ShapeDtypeStruct(x2.shape, x.dtype),
            grid_spec=pltpu.PrefetchScalarGridSpec(
                num_scalar_prefetch=0,
                grid=grid,
                in_specs=[s_spec, x_spec],
                out_specs=x_spec,
            ),
            compiler_params=pltpu.CompilerParams(
                dimension_semantics=("parallel", "parallel"),
                vmem_limit_bytes=_vmem_limit(C * t_hw * itemsize)),
            cost_estimate=cost,
        )(s3, x2)

    if channels_last:
        return out.transpose(0, 2, 1).reshape(N, C, H, W)
    return out.reshape(N, C, H, W)


def se_layer_ref(x, w1, w2):
    # Pure-JAX reference of the PyTorch forward.
    pooled = jnp.mean(x, axis=(2, 3))                               # GlobalPooling
    h = jnp.maximum(jnp.dot(pooled, w1.T, precision=_HIGHEST), 0.0)  # 1x1 conv + ReLU
    s = jax.nn.sigmoid(jnp.dot(h, w2.T, precision=_HIGHEST))         # 1x1 conv + Sigmoid
    return x * s[:, :, None, None]


if __name__ == "__main__":
    key = jax.random.PRNGKey(0)
    kx, k1, k2 = jax.random.split(key, 3)

    N, C, H, W = 2, 8, 16, 16
    reduction = 4
    Cr = C // reduction

    x = jax.random.normal(kx, (N, C, H, W), dtype=jnp.float32)
    # Deterministic synthetic weights (Conv2d 1x1, bias=False).
    w1 = jax.random.normal(k1, (Cr, C), dtype=jnp.float32) * 0.3   # squeeze
    w2 = jax.random.normal(k2, (C, Cr), dtype=jnp.float32) * 0.3   # excite

    ref = se_layer_ref(x, w1, w2)

    # Fused single-pass path.
    out = jax.block_until_ready(se_layer(x, w1, w2))
    assert out.shape == x.shape and out.dtype == x.dtype
    assert jnp.allclose(out, ref, atol=1e-5, rtol=1e-5)

    # VMEM-gated fallback path (forced, to validate it as well).
    out_fb = jax.block_until_ready(se_layer(x, w1, w2, single_pass=False))
    assert out_fb.shape == x.shape and out_fb.dtype == x.dtype
    assert jnp.allclose(out_fb, ref, atol=1e-5, rtol=1e-5)

    print("KERNEL_OK")
</pallas_src>

<mosaic_0001>
module attributes {stable_mosaic.version = 11 : i64} {
  func.func @_se_kernel(%arg0: i32, %arg1: memref<1x8x256xf32, #tpu.memory_space<vmem>>, %arg2: memref<8x2xf32, #tpu.memory_space<vmem>>, %arg3: memref<2x8xf32, #tpu.memory_space<vmem>>, %arg4: memref<1x8x256xf32, #tpu.memory_space<vmem>>) attributes {dimension_semantics = [#tpu.dimension_semantics<parallel>], iteration_bounds = array<i64: 2>, scalar_prefetch = 0 : i64, scratch_operands = 0 : i64, tpu.core_type = #tpu.core_type<tc>, window_params = [{transform_indices = @transform_0, window_bounds = array<i64: 1, 8, 256>}, {pipeline_mode = #tpu.pipeline_mode<synchronous>, transform_indices = @transform_1, window_bounds = array<i64: 8, 2>}, {pipeline_mode = #tpu.pipeline_mode<synchronous>, transform_indices = @transform_2, window_bounds = array<i64: 2, 8>}, {transform_indices = @transform_3, window_bounds = array<i64: 1, 8, 256>}]} {
    %c0 = arith.constant 0 : index
    %c0_0 = arith.constant 0 : index
    %c0_1 = arith.constant 0 : index
    %0 = vector.load %arg1[%c0, %c0_0, %c0_1] : memref<1x8x256xf32, #tpu.memory_space<vmem>>, vector<1x8x256xf32>
    %cst = arith.constant dense<0.000000e+00> : vector<1x8xf32>
    %1 = vector.multi_reduction <add>, %0, %cst [2] : vector<1x8x256xf32> to vector<1x8xf32>
    %cst_2 = arith.constant 3.906250e-03 : f32
    %2 = vector.broadcast %cst_2 : f32 to vector<1x8xf32>
    %3 = arith.mulf %1, %2 : vector<1x8xf32>
    %4 = vector.shape_cast %3 : vector<1x8xf32> to vector<1x8x1xf32>
    %c0_3 = arith.constant 0 : index
    %c0_4 = arith.constant 0 : index
    %5 = vector.load %arg2[%c0_3, %c0_4] : memref<8x2xf32, #tpu.memory_space<vmem>>, vector<8x2xf32>
    %6 = vector.shape_cast %5 : vector<8x2xf32> to vector<1x8x2xf32>
    %7 = vector.broadcast %4 : vector<1x8x1xf32> to vector<1x8x2xf32>
    %8 = arith.mulf %7, %6 : vector<1x8x2xf32>
    %cst_5 = arith.constant dense<0.000000e+00> : vector<1x2xf32>
    %9 = vector.multi_reduction <add>, %8, %cst_5 [1] : vector<1x8x2xf32> to vector<1x2xf32>
    %cst_6 = arith.constant 0.000000e+00 : f32
    %10 = vector.broadcast %cst_6 : f32 to vector<1x2xf32>
    %11 = arith.maximumf %9, %10 : vector<1x2xf32>
    %12 = vector.shape_cast %11 : vector<1x2xf32> to vector<1x2x1xf32>
    %c0_7 = arith.constant 0 : index
    %c0_8 = arith.constant 0 : index
    %13 = vector.load %arg3[%c0_7, %c0_8] : memref<2x8xf32, #tpu.memory_space<vmem>>, vector<2x8xf32>
    %14 = vector.shape_cast %13 : vector<2x8xf32> to vector<1x2x8xf32>
    %15 = vector.broadcast %12 : vector<1x2x1xf32> to vector<1x2x8xf32>
    %16 = arith.mulf %15, %14 : vector<1x2x8xf32>
    %cst_9 = arith.constant dense<0.000000e+00> : vector<1x8xf32>
    %17 = vector.multi_reduction <add>, %16, %cst_9 [1] : vector<1x2x8xf32> to vector<1x8xf32>
    %18 = arith.negf %17 : vector<1x8xf32>
    %19 = math.exp %18 : vector<1x8xf32>
    %cst_10 = arith.constant 1.000000e+00 : f32
    %20 = vector.broadcast %cst_10 : f32 to vector<1x8xf32>
    %21 = arith.addf %20, %19 : vector<1x8xf32>
    %22 = arith.divf %20, %21 : vector<1x8xf32>
    %c0_11 = arith.constant 0 : index
    %c0_12 = arith.constant 0 : index
    %c0_13 = arith.constant 0 : index
    %23 = vector.load %arg1[%c0_11, %c0_12, %c0_13] : memref<1x8x256xf32, #tpu.memory_space<vmem>>, vector<1x8x256xf32>
    %24 = vector.shape_cast %22 : vector<1x8xf32> to vector<1x8x1xf32>
    %25 = vector.broadcast %24 : vector<1x8x1xf32> to vector<1x8x256xf32>
    %26 = arith.mulf %23, %25 : vector<1x8x256xf32>
    %c0_14 = arith.constant 0 : index
    %c0_15 = arith.constant 0 : index
    %c0_16 = arith.constant 0 : index
    %27 = vector.load %arg4[%c0_14, %c0_15, %c0_16] : memref<1x8x256xf32, #tpu.memory_space<vmem>>, vector<1x8x256xf32>
    tpu.vector_store %arg4[%c0_14, %c0_15, %c0_16], %26 {strides = array<i32>} : memref<1x8x256xf32, #tpu.memory_space<vmem>>, vector<1x8x256xf32>,
    return
  }
  func.func @transform_0(%arg0: i32) -> (i32, i32, i32) {
    %c0_i32 = arith.constant 0 : i32
    %c0_i32_0 = arith.constant 0 : i32
    %c0_i32_1 = arith.constant 0 : i32
    return %arg0, %c0_i32, %c0_i32_0 : i32, i32, i32
  }
  func.func @transform_1(%arg0: i32) -> (i32, i32) {
    %c0_i32 = arith.constant 0 : i32
    %c0_i32_0 = arith.constant 0 : i32
    %c0_i32_1 = arith.constant 0 : i32
    return %c0_i32, %c0_i32_0 : i32, i32
  }
  func.func @transform_2(%arg0: i32) -> (i32, i32) {
    %c0_i32 = arith.constant 0 : i32
    %c0_i32_0 = arith.constant 0 : i32
    %c0_i32_1 = arith.constant 0 : i32
    return %c0_i32, %c0_i32_0 : i32, i32
  }
  func.func @transform_3(%arg0: i32) -> (i32, i32, i32) {
    %c0_i32 = arith.constant 0 : i32
    %c0_i32_0 = arith.constant 0 : i32
    %c0_i32_1 = arith.constant 0 : i32
    return %arg0, %c0_i32, %c0_i32_0 : i32, i32, i32
  }
}

</mosaic_0001>

<llo_original>
// kernel: tpu_custom_call.1
$region0: #{tpu_custom_call.1}
  #allocation0 [shape = 'u32[]', space=smem, size = 0x4, offset = 0x4, fixed_abs, tag = 'smem constant byte address 0x4 - core index']
  #allocation1 [shape = 'u32[72,128]{1,0:T(1,128)}', space=vmem, size = 0x9000, scoped, tag = 'internal scratch']
  %s0 = inlined_call_operand.hbm [shape: f32[2,8,256], index: 0, kind: input, shape index: {}]
  %s1 = inlined_call_operand.vmem [shape: f32[8,2], index: 1, kind: input, shape index: {}]
  %s2 = inlined_call_operand.vmem [shape: f32[2,8], index: 2, kind: input, shape index: {}]
  %s3 = inlined_call_operand.hbm [shape: f32[2,8,256], index: 3, kind: output, shape index: {}]
  %s4 = sld [smem:[#allocation0]]
  $region49: #{tpu_custom_call.1} parent=0
    _
  %s6 = ssub.s32 1, %s4
  %s7 = scalar_select 0, %s6, %s4
  $region1: #{tpu_custom_call.1} parent=0
    #allocation2 [shape = 'u8[16384]{0}', space=vmem, size = 0x4000, scoped, tag = 'input window, operand 0']
    #allocation3 [shape = 's32[2]{0}', space=sflag, size = 0x8, scoped, tag = 'scoped memory for tpu_custom_call.1']
    #allocation4 [shape = 's32[2]{0}', space=sflag, size = 0x8, scoped, tag = 'scoped memory for tpu_custom_call.1']
    #allocation5 [shape = 'u8[16384]{0}', space=vmem, size = 0x4000, scoped, tag = 'output window, operand 0']
    %8 = vsyncpa [#allocation3], 0
    %s9 = scalar_lea.sflag [#allocation3], 1
    %10 = vsyncpa %s9, 0
    %11 = vsyncpa [#allocation4], 0
    %s12 = scalar_lea.sflag [#allocation4], 1
    %13 = vsyncpa %s12, 0
    loop: start=0, step=1, limit=4
    $region2: #{tpu_custom_call.1} parent=1 // loop_pre_header
      _
    $region3: #{tpu_custom_call.1} parent=1 // loop_header
      %s15 = sphi 0, %s19
      %p16 = scmp.ge.s32.totalorder %s15, 4
      %s25 = sphi 0, %s27
      %s28 = sphi 0, %s25
      %s29 = sphi 0, %s28
      %s45 = sphi 0, %s29
      %s49 = sphi 0, %s49
      %s51 = sphi 0, %s49
      %s52 = sphi 0, %s51
      %s66 = sphi 0, %s52
      %s70 = sphi 0, %s70
      %s72 = sphi 0, %s70
      %s73 = sphi 0, %s72
      %s87 = sphi 0, %s73
      %s93 = sphi 0, %s95
      %s96 = sphi 0, %s93
      %s97 = sphi 0, %s96
      %s113 = sphi 0, %s97
    $region4: #{tpu_custom_call.1} parent=1 // loop_header_branch
      %18 = sbr.rel (%p16) target = $region8
    $region5: #{tpu_custom_call.1} parent=1 // loop_body
      %s20 = ssub.s32 %s15, 1
      %s21 = ssub.s32 %s15, 2
      %s22 = sadd.s32 %s15, 1
      %s23 = ssub.s32 %s15, %s22
      %p24 = scmp.eq.s32.totalorder %s23, 0
      %s26 = sadd.s32 %s25, 1
      %s27 = scalar_select %p24, %s25, %s26
      %p30 = pneg %p24
      %p31 = scmp.eq.s32.totalorder %s15, 1
      %p32 = por %p30, %p31
      %p33 = scmp.ne.s32.totalorder %s25, %s28
      %p34 = scmp.eq.s32.totalorder %s15, 0
      %p35 = por %p33, %p34
      %p36 = scmp.ne.s32.totalorder %s25, %s28
      %p37 = scmp.eq.s32.totalorder %s20, 1
      %p38 = por %p36, %p37
      %p39 = scmp.ne.s32.totalorder %s28, %s29
      %p40 = scmp.eq.s32.totalorder %s20, 0
      %p41 = por %p39, %p40
      %p42 = scmp.ne.s32.totalorder %s28, %s29
      %p43 = scmp.eq.s32.totalorder %s21, 1
      %p44 = por %p42, %p43
      %p46 = scmp.ne.s32.totalorder %s29, %s45
      %p47 = scmp.eq.s32.totalorder %s21, 0
      %p48 = por %p46, %p47
      %s50 = sadd.s32 %s49, 1
      %p53 = scmp.eq.s32.totalorder %s15, 1
      %p54 = scmp.ne.s32.totalorder %s49, %s51
      %p55 = scmp.eq.s32.totalorder %s15, 0
      %p56 = por %p54, %p55
      %p57 = scmp.ne.s32.totalorder %s49, %s51
      %p58 = scmp.eq.s32.totalorder %s20, 1
      %p59 = por %p57, %p58
      %p60 = scmp.ne.s32.totalorder %s51, %s52
      %p61 = scmp.eq.s32.totalorder %s20, 0
      %p62 = por %p60, %p61
      %p63 = scmp.ne.s32.totalorder %s51, %s52
      %p64 = scmp.eq.s32.totalorder %s21, 1
      %p65 = por %p63, %p64
      %p67 = scmp.ne.s32.totalorder %s52, %s66
      %p68 = scmp.eq.s32.totalorder %s21, 0
      %p69 = por %p67, %p68
      %s71 = sadd.s32 %s70, 1
      %p74 = scmp.eq.s32.totalorder %s15, 1
      %p75 = scmp.ne.s32.totalorder %s70, %s72
      %p76 = scmp.eq.s32.totalorder %s15, 0
      %p77 = por %p75, %p76
      %p78 = scmp.ne.s32.totalorder %s70, %s72
      %p79 = scmp.eq.s32.totalorder %s20, 1
      %p80 = por %p78, %p79
      %p81 = scmp.ne.s32.totalorder %s72, %s73
      %p82 = scmp.eq.s32.totalorder %s20, 0
      %p83 = por %p81, %p82
      %p84 = scmp.ne.s32.totalorder %s72, %s73
      %p85 = scmp.eq.s32.totalorder %s21, 1
      %p86 = por %p84, %p85
      %p88 = scmp.ne.s32.totalorder %s73, %s87
      %p89 = scmp.eq.s32.totalorder %s21, 0
      %p90 = por %p88, %p89
      %s91 = ssub.s32 %s15, %s22
      %p92 = scmp.eq.s32.totalorder %s91, 0
      %s94 = sadd.s32 %s93, 1
      %s95 = scalar_select %p92, %s93, %s94
      %p98 = pneg %p92
      %p99 = scmp.eq.s32.totalorder %s15, 1
      %p100 = por %p98, %p99
      %p101 = scmp.ne.s32.totalorder %s93, %s96
      %p102 = scmp.eq.s32.totalorder %s15, 0
      %p103 = por %p101, %p102
      %p104 = scmp.ne.s32.totalorder %s93, %s96
      %p105 = scmp.eq.s32.totalorder %s20, 1
      %p106 = por %p104, %p105
      %p107 = scmp.ne.s32.totalorder %s96, %s97
      %p108 = scmp.eq.s32.totalorder %s20, 0
      %p109 = por %p107, %p108
      %p110 = scmp.ne.s32.totalorder %s96, %s97
      %p111 = scmp.eq.s32.totalorder %s21, 1
      %p112 = por %p110, %p111
      %p114 = scmp.ne.s32.totalorder %s97, %s113
      %p115 = scmp.eq.s32.totalorder %s21, 0
      %p116 = por %p114, %p115
      %p117 = scmp.le.s32.totalorder 1, %s15
      %p118 = scmp.lt.s32.totalorder %s15, 3
      %p119 = pnand %p117, %p118
      %p120 = pneg %p119
      // Predicated region
      $region9: #{tpu_custom_call.1} parent=5 // pred_check
        _
      $region10: #{tpu_custom_call.1} parent=5 // pred_check_branch
        %122 = sbr.rel (%p119) target = $region12
      $region11: #{tpu_custom_call.1} parent=5 // pred_region
        %s123 = ssub.s32 %s15, 1
        // Predicated region
        $region13: #{tpu_custom_call.1} parent=11 // pred_check
          %p124 = pneg %p62
        $region14: #{tpu_custom_call.1} parent=11 // pred_check_branch
          %126 = sbr.rel (%p124) target = $region16
        $region15: #{tpu_custom_call.1} parent=11 // pred_region
          _
        $region16: #{tpu_custom_call.1} parent=11 // pred_fallthru
          _
        // Predicated region
        $region17: #{tpu_custom_call.1} parent=11 // pred_check
          %p127 = pneg %p83
        $region18: #{tpu_custom_call.1} parent=11 // pred_check_branch
          %129 = sbr.rel (%p127) target = $region20
        $region19: #{tpu_custom_call.1} parent=11 // pred_region
          _
        $region20: #{tpu_custom_call.1} parent=11 // pred_fallthru
          _
      $region12: #{tpu_custom_call.1} parent=5 // pred_fallthru
        _
      %p130 = scmp.lt.s32.totalorder %s15, 2
      // Predicated region
      $region21: #{tpu_custom_call.1} parent=5 // pred_check
        %p131 = pneg %p130
      $region22: #{tpu_custom_call.1} parent=5 // pred_check_branch
        %133 = sbr.rel (%p131) target = $region24
      $region23: #{tpu_custom_call.1} parent=5 // pred_region
        // Predicated region
        $region25: #{tpu_custom_call.1} parent=23 // pred_check
          %p134 = pneg %p35
        $region26: #{tpu_custom_call.1} parent=23 // pred_check_branch
          %136 = sbr.rel (%p134) target = $region28
        $region27: #{tpu_custom_call.1} parent=23 // pred_region
          %s137 = sand.u32 %s25, 1
          %s138 = scalar_lea.sflag [#allocation3], %s137
          %s139 = sand.u32 %s25, 1
          %s140 = smul.addr %s139, 16
          %s141 = scalar_lea.vmem [#allocation2], %s140
          %143 = vsyncadd %s138, 0
          %s144 = smul.addr %s15, 2
          %s145 = smul.addr %s144, 8
          %s146 = scalar_lea.hbm %s0, %s145
          %s148 = sshll.u32 %s146, 4
          %s149 = int_to_ptr.hbm [resolvable:$true] %s148
          %s150 = sshll.u32 %s141, 4
          %s151 = int_to_ptr.vmem [resolvable:$true] %s150
          %153 = dma.hbm_to_vmem [thread:$0]  %s149, 256, %s151, %s138
        $region28: #{tpu_custom_call.1} parent=23 // pred_fallthru
          _
      $region24: #{tpu_custom_call.1} parent=5 // pred_fallthru
        _
      %p154 = scmp.le.s32.totalorder 1, %s15
      %p155 = scmp.lt.s32.totalorder %s15, 3
      %p156 = pnand %p154, %p155
      %p157 = pneg %p156
      // Predicated region
      $region29: #{tpu_custom_call.1} parent=5 // pred_check
        _
      $region30: #{tpu_custom_call.1} parent=5 // pred_check_branch
        %159 = sbr.rel (%p156) target = $region32
      $region31: #{tpu_custom_call.1} parent=5 // pred_region
        %s160 = ssub.s32 %s15, 1
        %s161 = sand.u32 %s28, 1
        %s162 = scalar_lea.sflag [#allocation3], %s161
        %s163 = sand.u32 %s28, 1
        %s164 = smul.addr %s163, 16
        %s165 = scalar_lea.vmem [#allocation2], %s164
        // Predicated region
        $region33: #{tpu_custom_call.1} parent=31 // pred_check
          %p166 = pneg %p41
        $region34: #{tpu_custom_call.1} parent=31 // pred_check_branch
          %168 = sbr.rel (%p166) target = $region36
        $region35: #{tpu_custom_call.1} parent=31 // pred_region
          %170 = dma.done %s162, 256
        $region36: #{tpu_custom_call.1} parent=31 // pred_fallthru
          _
        %s171 = sand.u32 %s28, 1
        %s172 = scalar_lea.sflag [#allocation3], %s171
        %s173 = sand.u32 %s28, 1
        %s174 = smul.addr %s173, 16
        %s175 = scalar_lea.vmem [#allocation2], %s174
        %p176 = pneg %p41
        %p177 = pneg %p38
        %p178 = pneg %p62
        %p179 = pneg %p59
        %p180 = pneg %p83
        %p181 = pneg %p80
        %p182 = pneg %p109
        %p183 = pneg %p106
        %s184 = sand.u32 %s96, 1
        %s185 = scalar_lea.sflag [#allocation4], %s184
        %s186 = sand.u32 %s96, 1
        %s187 = smul.addr %s186, 16
        %s188 = scalar_lea.vmem [#allocation5], %s187
        %v189 = vld [vmem:[%s165] sm:$0xff]
        %v190 = vld [vmem:[%s165 + $0x8] sm:$0xff]
        %v191 = vadd.f32 %v189, %v190
        %192 = vadd.xlane.f32.xlu0 %v191
        %v193 = vpop.xlane.xlu0 %192
        %v194 = vmul.f32 %v193, 0.00390625
        %v195 = vld [vmem:[%s1] sm:$0xff]
        %v196 = vmul.f32 %v194, %v195
        %vm197 = vcmask 15360
        %v198 = vsel %vm197, %v196, 0.0
        %v199 = vrot.slane %v198, 4
        %v200 = vadd.f32 %v198, %v199
        %v201 = vrot.slane %v200, 2
        %v202 = vadd.f32 %v200, %v201
        %v203 = vrot.slane %v202, 1
        %v204 = vadd.f32 %v202, %v203
        %v205 = vmax.f32 %v204, 0.0
        %v206 = vlaneseq
        %v207 = vshrl.u32 %v206, 7
        %209 = vset.pattern.permute.xlu0 %v207
        %210 = vperm.xlu0 %209, %v205
        %v211 = vpop.permute.xlu0 %210
        %v212 = vld [vmem:[%s2] sm:$0x3]
        %v213 = vmul.f32 %v211, %v212
        %vm214 = vcmask 58368
        %v215 = vsel %vm214, %v213, 0.0
        %v216 = vrot.slane %v215, 4
        %v217 = vadd.f32 %v215, %v216
        %v218 = vrot.slane %v217, 2
        %v219 = vadd.f32 %v217, %v218
        %v220 = vrot.slane %v219, 1
        %v221 = vadd.f32 %v219, %v220
        %v222 = vxor.u32 %v221, 2147483648
        %v223 = vmul.f32 %v222, 1.442695
        %v224 = vpow.pop %v223
        %v225 = vadd.f32 %v224, 1.0
        %v226 = vrcp.pop %v225
        %v227 = vmul.f32 %v225, %v226
        %v228 = vsub.f32 1.0, %v227
        %v229 = vmul.f32 %v226, %v228
        %v230 = vadd.f32 %v226, %v229
        %vm231 = vweird.f32 %v225
        %vm232 = vweird.f32 %v226
        %vm233 = vmor %vm231, %vm232
        %v234 = vsel %vm233, %v226, %v230
        %v235 = vand.u32 2147483647, %v225
        %vm236 = vcmp.eq.f32.partialorder %v235, 8.507059e+37
        %v237 = vand.u32 %v225, 2147483648
        %v238 = vor.u32 1.1754944e-38, %v237
        %v239 = vsel %vm236, %v238, %v234
        %v240 = vmul.f32 1.0, %v239
        %v241 = vlaneseq
        %v242 = vshrl.u32 %v241, 7
        %244 = vset.pattern.permute.xlu0 %v242
        %245 = vperm.xlu0 %244, %v240
        %v246 = vpop.permute.xlu0 %245
        %v247 = vmul.f32 %v189, %v246
        %v248 = vmul.f32 %v190, %v246
        %249 = vst [vmem:[%s188] sm:$0xff] %v247
        %250 = vst [vmem:[%s188 + $0x8] sm:$0xff] %v248
        %s251 = sand.u32 %s96, 1
        %s252 = scalar_lea.sflag [#allocation4], %s251
        %s253 = sand.u32 %s96, 1
        %s254 = smul.addr %s253, 16
        %s255 = scalar_lea.vmem [#allocation5], %s254
        // Predicated region
        $region37: #{tpu_custom_call.1} parent=31 // pred_check
          %p256 = pneg %p106
        $region38: #{tpu_custom_call.1} parent=31 // pred_check_branch
          %258 = sbr.rel (%p256) target = $region40
        $region39: #{tpu_custom_call.1} parent=31 // pred_region
          %260 = vsyncadd %s252, 0
          %s261 = smul.addr %s20, 2
          %s262 = smul.addr %s261, 8
          %s263 = scalar_lea.hbm %s3, %s262
          %s265 = sshll.u32 %s255, 4
          %s266 = int_to_ptr.vmem [resolvable:$true] %s265
          %s267 = sshll.u32 %s263, 4
          %s268 = int_to_ptr.hbm [resolvable:$true] %s267
          %270 = dma.vmem_to_hbm [thread:$0]  %s266, 256, %s268, %s252
        $region40: #{tpu_custom_call.1} parent=31 // pred_fallthru
          _
      $region32: #{tpu_custom_call.1} parent=5 // pred_fallthru
        _
      %p271 = scmp.le.s32.totalorder 2, %s15
      // Predicated region
      $region41: #{tpu_custom_call.1} parent=5 // pred_check
        %p272 = pneg %p271
      $region42: #{tpu_custom_call.1} parent=5 // pred_check_branch
        %274 = sbr.rel (%p272) target = $region44
      $region43: #{tpu_custom_call.1} parent=5 // pred_region
        %s275 = ssub.s32 %s15, 2
        // Predicated region
        $region45: #{tpu_custom_call.1} parent=43 // pred_check
          %p276 = pneg %p112
        $region46: #{tpu_custom_call.1} parent=43 // pred_check_branch
          %278 = sbr.rel (%p276) target = $region48
        $region47: #{tpu_custom_call.1} parent=43 // pred_region
          %s279 = sand.u32 %s97, 1
          %s280 = scalar_lea.sflag [#allocation4], %s279
          %s281 = sand.u32 %s97, 1
          %s282 = smul.addr %s281, 16
          %s283 = scalar_lea.vmem [#allocation5], %s282
          %285 = dma.done %s280, 256
        $region48: #{tpu_custom_call.1} parent=43 // pred_fallthru
          _
      $region44: #{tpu_custom_call.1} parent=5 // pred_fallthru
        _
    $region6: #{tpu_custom_call.1} parent=1 // loop_footer
      %s19 = sadd.s32 1, %s15
    $region7: #{tpu_custom_call.1} parent=1 // loop_footer_branch
      %14 = sbr.rel target = $region3
    $region8: #{tpu_custom_call.1} parent=1 // loop_exit
      _
    %286 = vsyncpa [#allocation3], 1
    %s287 = scalar_lea.sflag [#allocation3], 1
    %288 = vsyncpa %s287, 1
    %289 = vsyncpa [#allocation4], 1
    %s290 = scalar_lea.sflag [#allocation4], 1
    %291 = vsyncpa %s290, 1

</llo_original>
